<compile_context>
chip_gen: v5e
topology: v5e:2x2
jax: 0.10.0
libtpu: 0.0.40
codegen_flags: <defaults>
</compile_context>

<pallas_src>
import jax
import jax.numpy as jnp
from jax.experimental import pallas as pl
from jax.experimental.pallas import tpu as pltpu

# ---------------------------------------------------------------------------
# Config (plays the role of `opt` in the PyTorch module) — kept SMALL.
# ---------------------------------------------------------------------------
VOCAB_SIZE     = 100
EMBEDDING_DIM  = 32
TITLE_DIM      = 16
SENT_LEN       = 16
SIN_KER_SIZE   = (1, 3)
DOU_KER_SIZE   = ((1, 3), (3, 3))
LINER_HID_SIZE = 32
NUM_CLASSES    = 8
BATCH          = 2
BN_EPS         = 1e-5

N_SIN    = len(SIN_KER_SIZE)
N_DOU    = len(DOU_KER_SIZE)
NUM_SEQ  = N_SIN + N_DOU
FEAT_DIM = NUM_SEQ * TITLE_DIM

KMAX1 = max(list(SIN_KER_SIZE) + [k[0] for k in DOU_KER_SIZE])    # layer-1 tap count
KMAX2 = max(k[1] for k in DOU_KER_SIZE)                           # layer-2 tap count

# Valid (un-padded) conv output lengths per branch (for masked max-pool).
SIN_LENS = [SENT_LEN - k + 1 for k in SIN_KER_SIZE]               # [16, 14]
DOU_LENS = [SENT_LEN - k1 - k2 + 2 for (k1, k2) in DOU_KER_SIZE]  # [14, 12]


# ---------------------------------------------------------------------------
# Pallas kernel
# ---------------------------------------------------------------------------
def _branch_mask(n_rows, lens):
    """(n_rows, len(lens)*TITLE_DIM) bool: position r valid for branch j iff r < lens[j]."""
    shape = (n_rows, len(lens) * TITLE_DIM)
    pos = jax.lax.broadcasted_iota(jnp.int32, shape, 0)
    ch = jax.lax.broadcasted_iota(jnp.int32, shape, 1)
    valid_len = jnp.full(shape, lens[0], jnp.int32)
    for j in range(1, len(lens)):
        valid_len = jnp.where(ch >= j * TITLE_DIM, lens[j], valid_len)
    return pos < valid_len


def textcnn_inc_kernel(xunf_ref, w1_ref, w2_ref, wfc_ref, vec_ref, out_ref):
    # Hoisted: read every operand exactly once.
    x   = xunf_ref[...]      # (B*L, KMAX1*C)                   im2col'd embeddings
    w1  = w1_ref[...]        # (KMAX1*C, NUM_SEQ*TITLE_DIM)     fused layer-1 weights (BN folded)
    w2  = w2_ref[...]        # (KMAX2*N_DOU*TD, N_DOU*TD)       block-diag layer-2 weights
    wfc = wfc_ref[...]       # (FEAT_DIM+HID, HID)              fc1(+BN folded) | fc2 (padded)
    vec = vec_ref[...]       # (4, FEAT_DIM)                    packed shifts / biases

    L = SENT_LEN
    B = x.shape[0] // L

    shift1 = vec[0:1, :]                        # (1, 64)
    shift2 = vec[1:2, :N_DOU * TITLE_DIM]       # (1, 32)
    fc1_b  = vec[2:3, :LINER_HID_SIZE]          # (1, 32)
    fc2_b  = vec[3:4, :NUM_CLASSES]             # (1, 8)

    # ---- layer 1: all four first-layer convs as ONE MXU matmul ------------------
    y1 = jnp.dot(x, w1, preferred_element_type=jnp.float32) + shift1
    y1 = jnp.maximum(y1, 0.0)                   # (B*L, NUM_SEQ*TITLE_DIM)

    sin_mask = _branch_mask(L, SIN_LENS)        # (L, 32)
    dou_mask = _branch_mask(L, DOU_LENS)        # (L, 32)
    zpad = jnp.zeros((KMAX2 - 1, N_DOU * TITLE_DIM), jnp.float32)

    sin_pools = []
    hunf_rows = []
    for b in range(B):                          # B is tiny & static -> unrolled
        y1_b = y1[b * L:(b + 1) * L, :]         # (L, 64)
        # sin branches: masked max-pool (ReLU output >= 0, so masking-to-0 is exact)
        sin_b = jnp.where(sin_mask, y1_b[:, :N_SIN * TITLE_DIM], 0.0)
        sin_pools.append(jnp.max(sin_b, axis=0, keepdims=True))          # (1, 32)
        # dou branches: in-kernel im2col of the first-conv activations
        h_b = jnp.concatenate([y1_b[:, N_SIN * TITLE_DIM:], zpad], axis=0)   # (L+K2-1, 32)
        hunf_rows.append(
            jnp.concatenate([h_b[dk:dk + L, :] for dk in range(KMAX2)], axis=-1))  # (L, 96)

    # ---- layer 2: both dou second convs as ONE block-diagonal MXU matmul --------
    hunf = jnp.concatenate(hunf_rows, axis=0)                  # (B*L, KMAX2*32)
    y2 = jnp.dot(hunf, w2, preferred_element_type=jnp.float32) + shift2
    y2 = jnp.maximum(y2, 0.0)                                  # (B*L, 32)

    dou_pools = [jnp.max(jnp.where(dou_mask, y2[b * L:(b + 1) * L, :], 0.0),
                         axis=0, keepdims=True) for b in range(B)]

    # Pooled features stay in vregs (no VMEM scratch round-trip).
    feat = jnp.concatenate(
        [jnp.concatenate([sin_pools[b], dou_pools[b]], axis=-1) for b in range(B)],
        axis=0)                                                # (B, FEAT_DIM)

    # ---- FC head: Linear(+BN folded) -> ReLU -> (Dropout=id) -> Linear ----------
    h = jnp.dot(feat, wfc[:FEAT_DIM, :], preferred_element_type=jnp.float32) + fc1_b
    h = jnp.maximum(h, 0.0)
    logits = jnp.dot(h, wfc[FEAT_DIM:, :], preferred_element_type=jnp.float32)
    out_ref[...] = logits[:, :NUM_CLASSES] + fc2_b


# ---------------------------------------------------------------------------
# Parameters (deterministic synthetic init, PyTorch-layout tensors)
# ---------------------------------------------------------------------------
def init_params(key):
    keys = iter(jax.random.split(key, 64))

    def nrm(shape, scale=0.1):
        return scale * jax.random.normal(next(keys), shape, dtype=jnp.float32)

    def conv_bn(c_in, k):
        return dict(w=nrm((TITLE_DIM, c_in, k)),          # torch Conv1d: (O, C, K)
                    b=nrm((TITLE_DIM,)),
                    gamma=1.0 + nrm((TITLE_DIM,)),
                    beta=nrm((TITLE_DIM,)),
                    mean=nrm((TITLE_DIM,)),
                    var=1.0 + jnp.abs(nrm((TITLE_DIM,))))

    return dict(
        embedding=nrm((VOCAB_SIZE, EMBEDDING_DIM), 1.0),
        sin=[conv_bn(EMBEDDING_DIM, k) for k in SIN_KER_SIZE],
        dou=[(conv_bn(EMBEDDING_DIM, k1), conv_bn(TITLE_DIM, k2))
             for (k1, k2) in DOU_KER_SIZE],
        fc1_w=nrm((LINER_HID_SIZE, FEAT_DIM)),            # torch Linear: (out, in)
        fc1_b=nrm((LINER_HID_SIZE,)),
        fc1_gamma=1.0 + nrm((LINER_HID_SIZE,)),
        fc1_beta=nrm((LINER_HID_SIZE,)),
        fc1_mean=nrm((LINER_HID_SIZE,)),
        fc1_var=1.0 + jnp.abs(nrm((LINER_HID_SIZE,))),
        fc2_w=nrm((NUM_CLASSES, LINER_HID_SIZE)),
        fc2_b=nrm((NUM_CLASSES,)),
    )


# ---------------------------------------------------------------------------
# Packing glue: fold BN, fuse branches, collapse 31 operands into 4.
# ---------------------------------------------------------------------------
def _bn_fold(gamma, beta, mean, var):
    scale = gamma / jnp.sqrt(var + BN_EPS)
    return scale, beta - mean * scale


def _pack_conv(p, kmax):
    """BN-folded conv weights: (kmax, C, O) weight (zero-padded taps) and (O,) shift."""
    w = jnp.transpose(p["w"], (2, 1, 0)).astype(jnp.float32)   # (K, C, O)
    K, C, O = w.shape
    scale, shift = _bn_fold(p["gamma"], p["beta"], p["mean"], p["var"])
    w = w * scale[None, None, :]
    if K < kmax:
        w = jnp.concatenate([w, jnp.zeros((kmax - K, C, O), jnp.float32)], axis=0)
    return w, scale * p["b"] + shift


def pack_inputs(params):
    # layer 1: [sin1, sin2, dou1_first, dou2_first] concatenated along output channels
    first = list(params["sin"]) + [p1 for (p1, _) in params["dou"]]
    w1_parts, s1_parts = zip(*[_pack_conv(p, KMAX1) for p in first])
    w1 = jnp.concatenate(w1_parts, axis=2).reshape(KMAX1 * EMBEDDING_DIM,
                                                   NUM_SEQ * TITLE_DIM)
    shift1 = jnp.concatenate(s1_parts)

    # layer 2: block-diagonal over the two dou second convs
    hw = N_DOU * TITLE_DIM
    w2 = jnp.zeros((KMAX2, hw, hw), jnp.float32)
    s2_parts = []
    for j, (_, p2) in enumerate(params["dou"]):
        w, s = _pack_conv(p2, KMAX2)                           # (KMAX2, 16, 16)
        sl = slice(j * TITLE_DIM, (j + 1) * TITLE_DIM)
        w2 = w2.at[:, sl, sl].set(w)
        s2_parts.append(s)
    w2 = w2.reshape(KMAX2 * hw, hw)
    shift2 = jnp.concatenate(s2_parts)

    # FC head: fold fc1's BN into its weight/bias, pad fc2 out-dim, stack as one slab.
    s, sh = _bn_fold(params["fc1_gamma"], params["fc1_beta"],
                     params["fc1_mean"], params["fc1_var"])
    fc1_w = params["fc1_w"].T * s[None, :]                     # (FEAT_DIM, HID)
    fc1_b = s * params["fc1_b"] + sh                           # (HID,)
    fc2_w = jnp.zeros((LINER_HID_SIZE, LINER_HID_SIZE),
                      jnp.float32).at[:, :NUM_CLASSES].set(params["fc2_w"].T)
    wfc = jnp.concatenate([fc1_w, fc2_w], axis=0)              # (FEAT_DIM+HID, HID)

    def row(v):
        return jnp.zeros((FEAT_DIM,), jnp.float32).at[:v.shape[0]].set(v)
    vec = jnp.stack([row(shift1), row(shift2), row(fc1_b), row(params["fc2_b"])])

    return w1, w2, wfc, vec


# ---------------------------------------------------------------------------
# Forward: embedding gather + im2col (glue) + one pallas_call for the hot path
# ---------------------------------------------------------------------------
@jax.jit
def textcnn_inc_forward(tokens, params):
    emb = params["embedding"][tokens].astype(jnp.float32)          # (B, L, C) gather = glue
    B, L, C = emb.shape
    emb = jnp.pad(emb, ((0, 0), (0, KMAX1 - 1), (0, 0)))           # zero-pad seq tail
    x_unf = jnp.concatenate([emb[:, dk:dk + L, :] for dk in range(KMAX1)],
                            axis=-1).reshape(B * L, KMAX1 * C)     # (B*L, 96) im2col

    w1, w2, wfc, vec = pack_inputs(params)

    return pl.pallas_call(
        textcnn_inc_kernel,
        out_shape=jax.ShapeDtypeStruct((B, NUM_CLASSES), jnp.float32),
        in_specs=[pl.BlockSpec(memory_space=pltpu.MemorySpace.VMEM)] * 5,
        out_specs=pl.BlockSpec(memory_space=pltpu.MemorySpace.VMEM),
    )(x_unf, w1, w2, wfc, vec)


# ---------------------------------------------------------------------------
# Pure-JAX reference (same eval-mode math, straight from the raw parameters)
# ---------------------------------------------------------------------------
def reference_forward(tokens, params):
    emb = params["embedding"][tokens].astype(jnp.float32)          # (B, L, C)

    def conv1d(x, w, b):        # x (B,L,C); torch w (O,C,K), b (O,)
        K = w.shape[2]
        Lo = x.shape[1] - K + 1
        acc = jnp.zeros((x.shape[0], Lo, w.shape[0]), jnp.float32)
        for dk in range(K):
            acc = acc + jnp.einsum("blc,oc->blo", x[:, dk:dk + Lo, :], w[:, :, dk])
        return acc + b[None, None, :]

    def bn(x, gamma, beta, mean, var):
        return (x - mean) * (gamma / jnp.sqrt(var + BN_EPS)) + beta

    def conv_bn_relu(x, p):
        return jax.nn.relu(bn(conv1d(x, p["w"], p["b"]),
                              p["gamma"], p["beta"], p["mean"], p["var"]))

    feats = []
    for p in params["sin"]:
        feats.append(jnp.max(conv_bn_relu(emb, p), axis=1))
    for (p1, p2) in params["dou"]:
        feats.append(jnp.max(conv_bn_relu(conv_bn_relu(emb, p1), p2), axis=1))
    feat = jnp.concatenate(feats, axis=1)

    h = feat @ params["fc1_w"].T + params["fc1_b"]
    h = jax.nn.relu(bn(h, params["fc1_gamma"], params["fc1_beta"],
                       params["fc1_mean"], params["fc1_var"]))
    return h @ params["fc2_w"].T + params["fc2_b"]


if __name__ == "__main__":
    key = jax.random.PRNGKey(0)
    pkey, tkey = jax.random.split(key)
    params = init_params(pkey)
    tokens = jax.random.randint(tkey, (BATCH, SENT_LEN), 0, VOCAB_SIZE,
                                dtype=jnp.int32)

    logits = jax.block_until_ready(textcnn_inc_forward(tokens, params))
    ref = reference_forward(tokens, params)

    assert logits.shape == (BATCH, NUM_CLASSES)
    assert jnp.allclose(logits, ref, atol=2e-2, rtol=2e-2), (
        f"max abs err {jnp.max(jnp.abs(logits - ref))}")
    print("KERNEL_OK")
</pallas_src>

<mosaic_0001>
module attributes {stable_mosaic.version = 11 : i64} {
  func.func @textcnn_inc_kernel(%arg0: memref<32x96xf32, #tpu.memory_space<vmem>>, %arg1: memref<96x64xf32, #tpu.memory_space<vmem>>, %arg2: memref<96x32xf32, #tpu.memory_space<vmem>>, %arg3: memref<96x32xf32, #tpu.memory_space<vmem>>, %arg4: memref<4x64xf32, #tpu.memory_space<vmem>>, %arg5: memref<2x8xf32, #tpu.memory_space<vmem>>) attributes {dimension_semantics = [], scalar_prefetch = 0 : i64, scratch_operands = 0 : i64, tpu.core_type = #tpu.core_type<tc>} {
    %c0 = arith.constant 0 : index
    %c0_0 = arith.constant 0 : index
    %0 = vector.load %arg0[%c0, %c0_0] : memref<32x96xf32, #tpu.memory_space<vmem>>, vector<32x96xf32>
    %c0_1 = arith.constant 0 : index
    %c0_2 = arith.constant 0 : index
    %1 = vector.load %arg1[%c0_1, %c0_2] : memref<96x64xf32, #tpu.memory_space<vmem>>, vector<96x64xf32>
    %c0_3 = arith.constant 0 : index
    %c0_4 = arith.constant 0 : index
    %2 = vector.load %arg2[%c0_3, %c0_4] : memref<96x32xf32, #tpu.memory_space<vmem>>, vector<96x32xf32>
    %c0_5 = arith.constant 0 : index
    %c0_6 = arith.constant 0 : index
    %3 = vector.load %arg3[%c0_5, %c0_6] : memref<96x32xf32, #tpu.memory_space<vmem>>, vector<96x32xf32>
    %c0_7 = arith.constant 0 : index
    %c0_8 = arith.constant 0 : index
    %4 = vector.load %arg4[%c0_7, %c0_8] : memref<4x64xf32, #tpu.memory_space<vmem>>, vector<4x64xf32>
    %5 = vector.extract_strided_slice %4 {offsets = [0, 0], sizes = [1, 64], strides = [1, 1]} : vector<4x64xf32> to vector<1x64xf32>
    %6 = vector.extract_strided_slice %4 {offsets = [1, 0], sizes = [1, 32], strides = [1, 1]} : vector<4x64xf32> to vector<1x32xf32>
    %7 = vector.extract_strided_slice %4 {offsets = [2, 0], sizes = [1, 32], strides = [1, 1]} : vector<4x64xf32> to vector<1x32xf32>
    %8 = vector.extract_strided_slice %4 {offsets = [3, 0], sizes = [1, 8], strides = [1, 1]} : vector<4x64xf32> to vector<1x8xf32>
    %cst = arith.constant dense<0.000000e+00> : vector<32x64xf32>
    %9 = tpu.matmul %0, %1, %cst {dimension_numbers = #tpu.dot_dimension_numbers<[1], [0], [0], [1], [0, 0, 1, 1], [], []>} : vector<32x96xf32>, vector<96x64xf32>, vector<32x64xf32> -> vector<32x64xf32>
    %10 = vector.broadcast %5 : vector<1x64xf32> to vector<32x64xf32>
    %11 = arith.addf %9, %10 : vector<32x64xf32>
    %cst_9 = arith.constant 0.000000e+00 : f32
    %12 = vector.broadcast %cst_9 : f32 to vector<32x64xf32>
    %13 = arith.maximumf %11, %12 : vector<32x64xf32>
    %14 = tpu.iota {dimensions = array<i32: 0>} : vector<16x32xi32>
    %15 = tpu.iota {dimensions = array<i32: 1>} : vector<16x32xi32>
    %c16_i32 = arith.constant 16 : i32
    %16 = vector.broadcast %c16_i32 : i32 to vector<16x32xi32>
    %c16_i32_10 = arith.constant 16 : i32
    %17 = vector.broadcast %c16_i32_10 : i32 to vector<16x32xi32>
    %18 = arith.cmpi sge, %15, %17 : vector<16x32xi32>
    %c14_i32 = arith.constant 14 : i32
    %19 = vector.broadcast %c14_i32 : i32 to vector<16x32xi32>
    %20 = arith.select %18, %19, %16 : vector<16x32xi1>, vector<16x32xi32>
    %21 = arith.cmpi slt, %14, %20 : vector<16x32xi32>
    %22 = tpu.iota {dimensions = array<i32: 0>} : vector<16x32xi32>
    %23 = tpu.iota {dimensions = array<i32: 1>} : vector<16x32xi32>
    %c14_i32_11 = arith.constant 14 : i32
    %24 = vector.broadcast %c14_i32_11 : i32 to vector<16x32xi32>
    %c16_i32_12 = arith.constant 16 : i32
    %25 = vector.broadcast %c16_i32_12 : i32 to vector<16x32xi32>
    %26 = arith.cmpi sge, %23, %25 : vector<16x32xi32>
    %c12_i32 = arith.constant 12 : i32
    %27 = vector.broadcast %c12_i32 : i32 to vector<16x32xi32>
    %28 = arith.select %26, %27, %24 : vector<16x32xi1>, vector<16x32xi32>
    %29 = arith.cmpi slt, %22, %28 : vector<16x32xi32>
    %cst_13 = arith.constant 0.000000e+00 : f32
    %30 = vector.broadcast %cst_13 : f32 to vector<2x32xf32>
    %31 = vector.extract_strided_slice %13 {offsets = [0, 0], sizes = [16, 64], strides = [1, 1]} : vector<32x64xf32> to vector<16x64xf32>
    %32 = vector.extract_strided_slice %31 {offsets = [0, 0], sizes = [16, 32], strides = [1, 1]} : vector<16x64xf32> to vector<16x32xf32>
    %cst_14 = arith.constant 0.000000e+00 : f32
    %33 = vector.broadcast %cst_14 : f32 to vector<16x32xf32>
    %34 = arith.select %21, %32, %33 : vector<16x32xi1>, vector<16x32xf32>
    %cst_15 = arith.constant dense<0xFF800000> : vector<32xf32>
    %35 = vector.multi_reduction <maximumf>, %34, %cst_15 [0] : vector<16x32xf32> to vector<32xf32>
    %36 = vector.shape_cast %35 : vector<32xf32> to vector<1x32xf32>
    %37 = vector.extract_strided_slice %31 {offsets = [0, 32], sizes = [16, 32], strides = [1, 1]} : vector<16x64xf32> to vector<16x32xf32>
    %38 = tpu.concatenate %37, %30 in 0 : vector<16x32xf32>, vector<2x32xf32> -> vector<18x32xf32>
    %39 = vector.extract_strided_slice %38 {offsets = [0, 0], sizes = [16, 32], strides = [1, 1]} : vector<18x32xf32> to vector<16x32xf32>
    %40 = vector.extract_strided_slice %38 {offsets = [1, 0], sizes = [16, 32], strides = [1, 1]} : vector<18x32xf32> to vector<16x32xf32>
    %41 = vector.extract_strided_slice %38 {offsets = [2, 0], sizes = [16, 32], strides = [1, 1]} : vector<18x32xf32> to vector<16x32xf32>
    %42 = tpu.concatenate %39, %40, %41 in 1 : vector<16x32xf32>, vector<16x32xf32>, vector<16x32xf32> -> vector<16x96xf32>
    %43 = vector.extract_strided_slice %13 {offsets = [16, 0], sizes = [16, 64], strides = [1, 1]} : vector<32x64xf32> to vector<16x64xf32>
    %44 = vector.extract_strided_slice %43 {offsets = [0, 0], sizes = [16, 32], strides = [1, 1]} : vector<16x64xf32> to vector<16x32xf32>
    %cst_16 = arith.constant 0.000000e+00 : f32
    %45 = vector.broadcast %cst_16 : f32 to vector<16x32xf32>
    %46 = arith.select %21, %44, %45 : vector<16x32xi1>, vector<16x32xf32>
    %cst_17 = arith.constant dense<0xFF800000> : vector<32xf32>
    %47 = vector.multi_reduction <maximumf>, %46, %cst_17 [0] : vector<16x32xf32> to vector<32xf32>
    %48 = vector.shape_cast %47 : vector<32xf32> to vector<1x32xf32>
    %49 = vector.extract_strided_slice %43 {offsets = [0, 32], sizes = [16, 32], strides = [1, 1]} : vector<16x64xf32> to vector<16x32xf32>
    %50 = tpu.concatenate %49, %30 in 0 : vector<16x32xf32>, vector<2x32xf32> -> vector<18x32xf32>
    %51 = vector.extract_strided_slice %50 {offsets = [0, 0], sizes = [16, 32], strides = [1, 1]} : vector<18x32xf32> to vector<16x32xf32>
    %52 = vector.extract_strided_slice %50 {offsets = [1, 0], sizes = [16, 32], strides = [1, 1]} : vector<18x32xf32> to vector<16x32xf32>
    %53 = vector.extract_strided_slice %50 {offsets = [2, 0], sizes = [16, 32], strides = [1, 1]} : vector<18x32xf32> to vector<16x32xf32>
    %54 = tpu.concatenate %51, %52, %53 in 1 : vector<16x32xf32>, vector<16x32xf32>, vector<16x32xf32> -> vector<16x96xf32>
    %55 = tpu.concatenate %42, %54 in 0 : vector<16x96xf32>, vector<16x96xf32> -> vector<32x96xf32>
    %cst_18 = arith.constant dense<0.000000e+00> : vector<32x32xf32>
    %56 = tpu.matmul %55, %2, %cst_18 {dimension_numbers = #tpu.dot_dimension_numbers<[1], [0], [0], [1], [0, 0, 1, 1], [], []>} : vector<32x96xf32>, vector<96x32xf32>, vector<32x32xf32> -> vector<32x32xf32>
    %57 = vector.broadcast %6 : vector<1x32xf32> to vector<32x32xf32>
    %58 = arith.addf %56, %57 : vector<32x32xf32>
    %cst_19 = arith.constant 0.000000e+00 : f32
    %59 = vector.broadcast %cst_19 : f32 to vector<32x32xf32>
    %60 = arith.maximumf %58, %59 : vector<32x32xf32>
    %61 = vector.extract_strided_slice %60 {offsets = [0, 0], sizes = [16, 32], strides = [1, 1]} : vector<32x32xf32> to vector<16x32xf32>
    %cst_20 = arith.constant 0.000000e+00 : f32
    %62 = vector.broadcast %cst_20 : f32 to vector<16x32xf32>
    %63 = arith.select %29, %61, %62 : vector<16x32xi1>, vector<16x32xf32>
    %cst_21 = arith.constant dense<0xFF800000> : vector<32xf32>
    %64 = vector.multi_reduction <maximumf>, %63, %cst_21 [0] : vector<16x32xf32> to vector<32xf32>
    %65 = vector.shape_cast %64 : vector<32xf32> to vector<1x32xf32>
    %66 = vector.extract_strided_slice %60 {offsets = [16, 0], sizes = [16, 32], strides = [1, 1]} : vector<32x32xf32> to vector<16x32xf32>
    %cst_22 = arith.constant 0.000000e+00 : f32
    %67 = vector.broadcast %cst_22 : f32 to vector<16x32xf32>
    %68 = arith.select %29, %66, %67 : vector<16x32xi1>, vector<16x32xf32>
    %cst_23 = arith.constant dense<0xFF800000> : vector<32xf32>
    %69 = vector.multi_reduction <maximumf>, %68, %cst_23 [0] : vector<16x32xf32> to vector<32xf32>
    %70 = vector.shape_cast %69 : vector<32xf32> to vector<1x32xf32>
    %71 = tpu.concatenate %36, %65 in 1 : vector<1x32xf32>, vector<1x32xf32> -> vector<1x64xf32>
    %72 = tpu.concatenate %48, %70 in 1 : vector<1x32xf32>, vector<1x32xf32> -> vector<1x64xf32>
    %73 = tpu.concatenate %71, %72 in 0 : vector<1x64xf32>, vector<1x64xf32> -> vector<2x64xf32>
    %74 = vector.extract_strided_slice %3 {offsets = [0, 0], sizes = [64, 32], strides = [1, 1]} : vector<96x32xf32> to vector<64x32xf32>
    %cst_24 = arith.constant dense<0.000000e+00> : vector<2x32xf32>
    %75 = tpu.matmul %73, %74, %cst_24 {dimension_numbers = #tpu.dot_dimension_numbers<[1], [0], [0], [1], [0, 0, 1, 1], [], []>} : vector<2x64xf32>, vector<64x32xf32>, vector<2x32xf32> -> vector<2x32xf32>
    %76 = vector.broadcast %7 : vector<1x32xf32> to vector<2x32xf32>
    %77 = arith.addf %75, %76 : vector<2x32xf32>
    %cst_25 = arith.constant 0.000000e+00 : f32
    %78 = vector.broadcast %cst_25 : f32 to vector<2x32xf32>
    %79 = arith.maximumf %77, %78 : vector<2x32xf32>
    %80 = vector.extract_strided_slice %3 {offsets = [64, 0], sizes = [32, 32], strides = [1, 1]} : vector<96x32xf32> to vector<32x32xf32>
    %cst_26 = arith.constant dense<0.000000e+00> : vector<2x32xf32>
    %81 = tpu.matmul %79, %80, %cst_26 {dimension_numbers = #tpu.dot_dimension_numbers<[1], [0], [0], [1], [0, 0, 1, 1], [], []>} : vector<2x32xf32>, vector<32x32xf32>, vector<2x32xf32> -> vector<2x32xf32>
    %82 = vector.extract_strided_slice %81 {offsets = [0, 0], sizes = [2, 8], strides = [1, 1]} : vector<2x32xf32> to vector<2x8xf32>
    %83 = vector.broadcast %8 : vector<1x8xf32> to vector<2x8xf32>
    %84 = arith.addf %82, %83 : vector<2x8xf32>
    %c0_27 = arith.constant 0 : index
    %c0_28 = arith.constant 0 : index
    %85 = vector.load %arg5[%c0_27, %c0_28] : memref<2x8xf32, #tpu.memory_space<vmem>>, vector<2x8xf32>
    tpu.vector_store %arg5[%c0_27, %c0_28], %84 {strides = array<i32>} : memref<2x8xf32, #tpu.memory_space<vmem>>, vector<2x8xf32>,
    return
  }
}

</mosaic_0001>

<llo_original>
// kernel: textcnn_inc_forward.1
$region0: #{textcnn_inc_forward.1}
  #allocation0 [shape = 'u32[]', space=smem, size = 0x4, offset = 0x4, fixed_abs, tag = 'smem constant byte address 0x4 - core index']
  #allocation1 [shape = 'u32[72,128]{1,0:T(1,128)}', space=vmem, size = 0x9000, scoped, tag = 'internal scratch']
  %s0 = inlined_call_operand.vmem [shape: f32[32,96], index: 0, kind: input, shape index: {}]
  %s1 = inlined_call_operand.vmem [shape: f32[96,64], index: 1, kind: input, shape index: {}]
  %s2 = inlined_call_operand.vmem [shape: f32[96,32], index: 2, kind: input, shape index: {}]
  %s3 = inlined_call_operand.vmem [shape: f32[96,32], index: 3, kind: input, shape index: {}]
  %s4 = inlined_call_operand.vmem [shape: f32[4,64], index: 4, kind: input, shape index: {}]
  %s5 = inlined_call_operand.hbm [shape: f32[2,8], index: 5, kind: output, shape index: {}]
  %s6 = sld [smem:[#allocation0]]
  $region30: #{textcnn_inc_forward.1} parent=0
    _
  %s8 = ssub.s32 1, %s6
  %s9 = scalar_select 0, %s8, %s6
  $region1: #{textcnn_inc_forward.1} parent=0
    #allocation2 [shape = 'u8[1024]{0}', space=vmem, size = 0x400, scoped, tag = 'output window, operand 0, single buffered']
    #allocation3 [shape = 's32[1]{0}', space=sflag, size = 0x4, scoped, tag = 'scoped memory for textcnn_inc_forward.1']
    %10 = vsyncpa [#allocation3], 0
    // Predicated region
    $region2: #{textcnn_inc_forward.1} parent=1 // pred_check
      _
    $region3: #{textcnn_inc_forward.1} parent=1 // pred_check_branch
      %12 = sbr.rel (0) target = $region5
    $region4: #{textcnn_inc_forward.1} parent=1 // pred_region
      _
    $region5: #{textcnn_inc_forward.1} parent=1 // pred_fallthru
      _
    // Predicated region
    $region6: #{textcnn_inc_forward.1} parent=1 // pred_check
      _
    $region7: #{textcnn_inc_forward.1} parent=1 // pred_check_branch
      %14 = sbr.rel (0) target = $region9
    $region8: #{textcnn_inc_forward.1} parent=1 // pred_region
      _
    $region9: #{textcnn_inc_forward.1} parent=1 // pred_fallthru
      _
    // Predicated region
    $region10: #{textcnn_inc_forward.1} parent=1 // pred_check
      _
    $region11: #{textcnn_inc_forward.1} parent=1 // pred_check_branch
      %16 = sbr.rel (0) target = $region13
    $region12: #{textcnn_inc_forward.1} parent=1 // pred_region
      _
    $region13: #{textcnn_inc_forward.1} parent=1 // pred_fallthru
      _
    // Predicated region
    $region14: #{textcnn_inc_forward.1} parent=1 // pred_check
      _
    $region15: #{textcnn_inc_forward.1} parent=1 // pred_check_branch
      %18 = sbr.rel (0) target = $region17
    $region16: #{textcnn_inc_forward.1} parent=1 // pred_region
      _
    $region17: #{textcnn_inc_forward.1} parent=1 // pred_fallthru
      _
    // Predicated region
    $region18: #{textcnn_inc_forward.1} parent=1 // pred_check
      _
    $region19: #{textcnn_inc_forward.1} parent=1 // pred_check_branch
      %20 = sbr.rel (0) target = $region21
    $region20: #{textcnn_inc_forward.1} parent=1 // pred_region
      _
    $region21: #{textcnn_inc_forward.1} parent=1 // pred_fallthru
      _
    %v21 = vld [vmem:[%s0] sm:$0xff]
    %v22 = vld [vmem:[%s0 + $0x8] sm:$0xff]
    %v23 = vld [vmem:[%s0 + $0x10] sm:$0xff]
    %v24 = vld [vmem:[%s0 + $0x18] sm:$0xff]
    %v25 = vld [vmem:[%s1] sm:$0xff]
    %v26 = vld [vmem:[%s1 + $0x8] sm:$0xff]
    %v27 = vld [vmem:[%s1 + $0x10] sm:$0xff]
    %v28 = vld [vmem:[%s1 + $0x18] sm:$0xff]
    %v29 = vld [vmem:[%s1 + $0x20] sm:$0xff]
    %v30 = vld [vmem:[%s1 + $0x28] sm:$0xff]
    %v31 = vld [vmem:[%s1 + $0x30] sm:$0xff]
    %v32 = vld [vmem:[%s1 + $0x38] sm:$0xff]
    %v33 = vld [vmem:[%s1 + $0x40] sm:$0xff]
    %v34 = vld [vmem:[%s1 + $0x48] sm:$0xff]
    %v35 = vld [vmem:[%s1 + $0x50] sm:$0xff]
    %v36 = vld [vmem:[%s1 + $0x58] sm:$0xff]
    %v37 = vld [vmem:[%s2] sm:$0xff]
    %v38 = vld [vmem:[%s2 + $0x8] sm:$0xff]
    %v39 = vld [vmem:[%s2 + $0x10] sm:$0xff]
    %v40 = vld [vmem:[%s2 + $0x18] sm:$0xff]
    %v41 = vld [vmem:[%s2 + $0x20] sm:$0xff]
    %v42 = vld [vmem:[%s2 + $0x28] sm:$0xff]
    %v43 = vld [vmem:[%s2 + $0x30] sm:$0xff]
    %v44 = vld [vmem:[%s2 + $0x38] sm:$0xff]
    %v45 = vld [vmem:[%s2 + $0x40] sm:$0xff]
    %v46 = vld [vmem:[%s2 + $0x48] sm:$0xff]
    %v47 = vld [vmem:[%s2 + $0x50] sm:$0xff]
    %v48 = vld [vmem:[%s2 + $0x58] sm:$0xff]
    %v49 = vld [vmem:[%s3] sm:$0xff]
    %v50 = vld [vmem:[%s3 + $0x8] sm:$0xff]
    %v51 = vld [vmem:[%s3 + $0x10] sm:$0xff]
    %v52 = vld [vmem:[%s3 + $0x18] sm:$0xff]
    %v53 = vld [vmem:[%s3 + $0x20] sm:$0xff]
    %v54 = vld [vmem:[%s3 + $0x28] sm:$0xff]
    %v55 = vld [vmem:[%s3 + $0x30] sm:$0xff]
    %v56 = vld [vmem:[%s3 + $0x38] sm:$0xff]
    %v57 = vld [vmem:[%s3 + $0x40] sm:$0xff]
    %v58 = vld [vmem:[%s3 + $0x48] sm:$0xff]
    %v59 = vld [vmem:[%s3 + $0x50] sm:$0xff]
    %v60 = vld [vmem:[%s3 + $0x58] sm:$0xff]
    %v61 = vld [vmem:[%s4] sm:$0xf]
    %v62 = vperm.slane %v61, 0
    %vm63 = vcmask 785408
    %v65 = vsel %vm63, %v21, 0
    %v68 = vsel %vm63, %v22, 0
    %v71 = vsel %vm63, %v23, 0
    %v74 = vsel %vm63, %v24, 0
    %76 = vmatpush.msra.mxu0 0.0
    %77 = vmatpush.msra.mxu0 0.0
    %78 = vmatpush.msra.mxu0 0.0
    %79 = vmatpush.msra.mxu0 0.0
    %80 = vmatpush.msra.mxu0 %v36
    %81 = vmatpush.msra.mxu0 %v35
    %82 = vmatpush.msra.mxu0 %v34
    %83 = vmatpush.msra.mxu0 %v33
    %84 = vmatpush.msra.mxu0 %v32
    %85 = vmatpush.msra.mxu0 %v31
    %86 = vmatpush.msra.mxu0 %v30
    %87 = vmatpush.msra.mxu0 %v29
    %88 = vmatpush.msra.mxu0 %v28
    %89 = vmatpush.msra.mxu0 %v27
    %90 = vmatpush.msra.mxu0 %v26
    %91 = vmatpush.msra.mxu0 %v25
    %92 = vmatmul.f32.gmra.mxu0 %v65
    %v93 = vpop.f32.mrf.mxu0
    %v94 = vadd.f32 %v62, %v93
    %95 = vmatmul.f32.gmra.mxu0 %v68
    %v96 = vpop.f32.mrf.mxu0
    %v97 = vadd.f32 %v62, %v96
    %98 = vmatmul.f32.gmra.mxu0 %v71
    %v99 = vpop.f32.mrf.mxu0
    %v100 = vadd.f32 %v62, %v99
    %101 = vmatmul.f32.gmra.mxu0 %v74
    %v102 = vpop.f32.mrf.mxu0
    %v103 = vadd.f32 %v62, %v102
    %104 = vdwg.mxu0
    %v105 = vmax.f32 %v94, 0.0
    %v106 = vmax.f32 %v97, 0.0
    %v107 = vmax.f32 %v100, 0.0
    %v108 = vmax.f32 %v103, 0.0
    %v109 = vlaneseq
    %v110 = vshrl.u32 %v109, 7
    %v111 = vadd.s32 %v110, 8
    %v112 = vlaneseq
    %v113 = vand.u32 %v112, 127
    %vm114 = vcmp.ge.s32.totalorder %v113, 16
    %v115 = vsel %vm114, 14, 16
    %vm116 = vcmp.lt.s32.totalorder %v110, %v115
    %vm117 = vcmp.lt.s32.totalorder %v111, %v115
    %v118 = vsel %vm114, 12, 14
    %vm119 = vcmp.lt.s32.totalorder %v110, %v118
    %vm120 = vcmp.lt.s32.totalorder %v111, %v118
    %v121 = vsel %vm116, %v105, 0.0
    %v122 = vsel %vm117, %v106, 0.0
    %vm123 = vcmask 261120
    %v124 = vsel %vm123, %v121, -inf
    %v125 = vsel %vm123, %v122, -inf
    %v126 = vmax.f32 %v124, %v125
    %v127 = vrot.slane %v126, 4
    %v128 = vmax.f32 %v126, %v127
    %v129 = vrot.slane %v128, 2
    %v130 = vmax.f32 %v128, %v129
    %v131 = vrot.slane %v130, 1
    %v132 = vmax.f32 %v130, %v131
    %135 = vrot.lane.b32.xlu0 %v105, 96
    %v136 = vpop.permute.xlu0 %135
    %137 = vrot.lane.b32.xlu0 %v106, 96
    %v138 = vpop.permute.xlu0 %137
    %vm142 = vcmask 1046528
    %v143 = vrot.slane %v105, 1
    %v144 = vrot.slane %v106, 1
    %v145 = vsel %vm142, %v143, %v144
    %v146 = vrot.slane 0.0, 1
    %v147 = vsel %vm142, %v144, %v146
    %vm150 = vcmask 1045504
    %v151 = vrot.slane %v105, 2
    %v152 = vrot.slane %v106, 2
    %v153 = vsel %vm150, %v151, %v152
    %v154 = vrot.slane 0.0, 2
    %v155 = vsel %vm150, %v152, %v154
    %156 = vrot.lane.b32.xlu0 %v153, 32
    %v157 = vpop.permute.xlu0 %156
    %158 = vrot.lane.b32.xlu0 %v155, 32
    %v159 = vpop.permute.xlu0 %158
    %v162 = vsel %vm123, %v136, %v145
    %v163 = vsel %vm123, %v138, %v147
    %vm164 = vcmask 523264
    %v165 = vsel %vm164, %v162, %v157
    %v166 = vsel %vm164, %v163, %v159
    %v167 = vsel %vm116, %v107, 0.0
    %v168 = vsel %vm117, %v108, 0.0
    %v169 = vsel %vm123, %v167, -inf
    %v170 = vsel %vm123, %v168, -inf
    %v171 = vmax.f32 %v169, %v170
    %v172 = vrot.slane %v171, 4
    %v173 = vmax.f32 %v171, %v172
    %v174 = vrot.slane %v173, 2
    %v175 = vmax.f32 %v173, %v174
    %v176 = vrot.slane %v175, 1
    %v177 = vmax.f32 %v175, %v176
    %180 = vrot.lane.b32.xlu0 %v107, 96
    %v181 = vpop.permute.xlu0 %180
    %182 = vrot.lane.b32.xlu0 %v108, 96
    %v183 = vpop.permute.xlu0 %182
    %v186 = vrot.slane %v107, 1
    %v187 = vrot.slane %v108, 1
    %v188 = vsel %vm142, %v186, %v187
    %v189 = vsel %vm142, %v187, %v146
    %v192 = vrot.slane %v107, 2
    %v193 = vrot.slane %v108, 2
    %v194 = vsel %vm150, %v192, %v193
    %v195 = vsel %vm150, %v193, %v154
    %196 = vrot.lane.b32.xlu0 %v194, 32
    %v197 = vpop.permute.xlu0 %196
    %198 = vrot.lane.b32.xlu0 %v195, 32
    %v199 = vpop.permute.xlu0 %198
    %v202 = vsel %vm123, %v181, %v188
    %v203 = vsel %vm123, %v183, %v189
    %v204 = vsel %vm164, %v202, %v197
    %v205 = vsel %vm164, %v203, %v199
    %v206 = vperm.slane %v61, 1
    %v208 = vsel %vm63, %v165, 0
    %v211 = vsel %vm63, %v166, 0
    %v214 = vsel %vm63, %v204, 0
    %v217 = vsel %vm63, %v205, 0
    %219 = vmatpush.msra.mxu0 0.0
    %220 = vmatpush.msra.mxu0 0.0
    %221 = vmatpush.msra.mxu0 0.0
    %222 = vmatpush.msra.mxu0 0.0
    %223 = vmatpush.msra.mxu0 %v48
    %224 = vmatpush.msra.mxu0 %v47
    %225 = vmatpush.msra.mxu0 %v46
    %226 = vmatpush.msra.mxu0 %v45
    %227 = vmatpush.msra.mxu0 %v44
    %228 = vmatpush.msra.mxu0 %v43
    %229 = vmatpush.msra.mxu0 %v42
    %230 = vmatpush.msra.mxu0 %v41
    %231 = vmatpush.msra.mxu0 %v40
    %232 = vmatpush.msra.mxu0 %v39
    %233 = vmatpush.msra.mxu0 %v38
    %234 = vmatpush.msra.mxu0 %v37
    %235 = vmatmul.f32.gmra.mxu0 %v208
    %v236 = vpop.f32.mrf.mxu0
    %v237 = vadd.f32 %v206, %v236
    %238 = vmatmul.f32.gmra.mxu0 %v211
    %v239 = vpop.f32.mrf.mxu0
    %v240 = vadd.f32 %v206, %v239
    %241 = vmatmul.f32.gmra.mxu0 %v214
    %v242 = vpop.f32.mrf.mxu0
    %v243 = vadd.f32 %v206, %v242
    %244 = vmatmul.f32.gmra.mxu0 %v217
    %v245 = vpop.f32.mrf.mxu0
    %v246 = vadd.f32 %v206, %v245
    %247 = vdwg.mxu0
    %v248 = vmax.f32 %v237, 0.0
    %v249 = vmax.f32 %v240, 0.0
    %v250 = vmax.f32 %v243, 0.0
    %v251 = vmax.f32 %v246, 0.0
    %v252 = vsel %vm119, %v248, 0.0
    %v253 = vsel %vm120, %v249, 0.0
    %v254 = vsel %vm123, %v252, -inf
    %v255 = vsel %vm123, %v253, -inf
    %v256 = vmax.f32 %v254, %v255
    %v257 = vrot.slane %v256, 4
    %v258 = vmax.f32 %v256, %v257
    %v259 = vrot.slane %v258, 2
    %v260 = vmax.f32 %v258, %v259
    %v261 = vrot.slane %v260, 1
    %v262 = vmax.f32 %v260, %v261
    %v263 = vsel %vm119, %v250, 0.0
    %v264 = vsel %vm120, %v251, 0.0
    %v265 = vsel %vm123, %v263, -inf
    %v266 = vsel %vm123, %v264, -inf
    %v267 = vmax.f32 %v265, %v266
    %v268 = vrot.slane %v267, 4
    %v269 = vmax.f32 %v267, %v268
    %v270 = vrot.slane %v269, 2
    %v271 = vmax.f32 %v269, %v270
    %v272 = vrot.slane %v271, 1
    %v273 = vmax.f32 %v271, %v272
    %275 = vrot.lane.b32.xlu0 %v262, 32
    %v276 = vpop.permute.xlu0 %275
    %v278 = vsel %vm123, %v132, %v276
    %280 = vrot.lane.b32.xlu0 %v273, 32
    %v281 = vpop.permute.xlu0 %280
    %v283 = vsel %vm123, %v177, %v281
    %v285 = vrot.slane %v283, 7
    %vm287 = vcmask 1040384
    %v288 = vsel %vm287, %v278, %v285
    %v289 = vperm.slane %v61, 2
    %v291 = vsel %vm164, %v288, 0
    %293 = vmatpush.msra.mxu0 0.0
    %294 = vmatpush.msra.mxu0 0.0
    %295 = vmatpush.msra.mxu0 0.0
    %296 = vmatpush.msra.mxu0 0.0
    %297 = vmatpush.msra.mxu0 0.0
    %298 = vmatpush.msra.mxu0 0.0
    %299 = vmatpush.msra.mxu0 0.0
    %300 = vmatpush.msra.mxu0 0.0
    %301 = vmatpush.msra.mxu0 %v56
    %302 = vmatpush.msra.mxu0 %v55
    %303 = vmatpush.msra.mxu0 %v54
    %304 = vmatpush.msra.mxu0 %v53
    %305 = vmatpush.msra.mxu0 %v52
    %306 = vmatpush.msra.mxu0 %v51
    %307 = vmatpush.msra.mxu0 %v50
    %308 = vmatpush.msra.mxu0 %v49
    %309 = vmatmul.f32.gmra.mxu0 %v291
    %v310 = vpop.f32.mrf.mxu0
    %v311 = vadd.f32 %v289, %v310
    %312 = vdwg.mxu0
    %v313 = vmax.f32 %v311, 0.0
    %v315 = vsel %vm123, %v313, 0
    %317 = vmatpush.msra.mxu0 0.0
    %318 = vmatpush.msra.mxu0 0.0
    %319 = vmatpush.msra.mxu0 0.0
    %320 = vmatpush.msra.mxu0 0.0
    %321 = vmatpush.msra.mxu0 0.0
    %322 = vmatpush.msra.mxu0 0.0
    %323 = vmatpush.msra.mxu0 0.0
    %324 = vmatpush.msra.mxu0 0.0
    %325 = vmatpush.msra.mxu0 0.0
    %326 = vmatpush.msra.mxu0 0.0
    %327 = vmatpush.msra.mxu0 0.0
    %328 = vmatpush.msra.mxu0 0.0
    %329 = vmatpush.msra.mxu0 %v60
    %330 = vmatpush.msra.mxu0 %v59
    %331 = vmatpush.msra.mxu0 %v58
    %332 = vmatpush.msra.mxu0 %v57
    %333 = vmatmul.f32.gmra.mxu0 %v315
    %v334 = vpop.f32.mrf.mxu0
    %v335 = vadd.f32 0.0, %v334
    %336 = vdwg.mxu0
    %v337 = vperm.slane %v61, 3
    %v338 = vadd.f32 %v335, %v337
    %vm339 = vcmask 58368
    %340 = vst.msk [vmem:[#allocation2] sm:$0x3] %vm339, %v338
    // Predicated region
    $region22: #{textcnn_inc_forward.1} parent=1 // pred_check
      _
    $region23: #{textcnn_inc_forward.1} parent=1 // pred_check_branch
      %342 = sbr.rel (0) target = $region25
    $region24: #{textcnn_inc_forward.1} parent=1 // pred_region
      %344 = vsyncadd [#allocation3], 0
      %s346 = sshll.u32 [#allocation2], 4
      %s347 = int_to_ptr.vmem [resolvable:$true] %s346
      %s348 = sshll.u32 %s5, 4
      %s349 = int_to_ptr.hbm [resolvable:$true] %s348
      %351 = dma.vmem_to_hbm [thread:$0]  %s347, 32, %s349, [#allocation3]
    $region25: #{textcnn_inc_forward.1} parent=1 // pred_fallthru
      _
    // Predicated region
    $region26: #{textcnn_inc_forward.1} parent=1 // pred_check
      _
    $region27: #{textcnn_inc_forward.1} parent=1 // pred_check_branch
      %353 = sbr.rel (0) target = $region29
    $region28: #{textcnn_inc_forward.1} parent=1 // pred_region
      %355 = dma.done [#allocation3], 32
    $region29: #{textcnn_inc_forward.1} parent=1 // pred_fallthru
      _
    %356 = vsyncpa [#allocation3], 1

</llo_original>
